<compile_context>
chip_gen: v5e
topology: v5e:2x2
jax: 0.10.0
libtpu: 0.0.40
codegen_flags: <defaults>
</compile_context>

<pallas_src>
import jax
import jax.numpy as jnp
from jax.experimental import pallas as pl
from jax.experimental.pallas import tpu as pltpu

H = 40  # true hidden width from the module config (multiple of 8 sublanes)


def mlp_kernel(x_ref, w1_ref, b1_ref, w2_ref, b2_ref, w3_ref, b3_ref, o_ref):
    x = x_ref[...]                                                  # (1, TB)
    # Layer 1 (in_features = 1): outer-product broadcast on the VPU,
    # no MXU pass wasted on a K=1 matmul.
    h = jnp.maximum(w1_ref[...] * x + b1_ref[...], 0.0)            # (H, TB)
    # Layer 2 (H x H): the only real matmul -> MXU with f32 accumulation.
    h = jnp.dot(w2_ref[...], h,
                preferred_element_type=jnp.float32) + b2_ref[...]  # (H, TB)
    h = jnp.maximum(h, 0.0)
    # Layer 3 (out_features = 1): VPU multiply + XLU sublane reduction.
    o = jnp.sum(w3_ref[...] * h, axis=0, keepdims=True) + b3_ref[...]  # (1, TB)
    o_ref[...] = o.astype(o_ref.dtype)


def prepare_params(params):
    """One-time repack of torch-shaped params into kernel layout.
    Hoisted out of the per-call forward path (perf review item)."""
    return {
        "w1": params["w1"].astype(jnp.float32).reshape(H, 1),   # (40, 1)
        "b1": params["b1"].astype(jnp.float32).reshape(H, 1),   # (40, 1)
        "w2": params["w2"].astype(jnp.float32),                 # (40, 40)
        "b2": params["b2"].astype(jnp.float32).reshape(H, 1),   # (40, 1)
        "w3": params["w3"].astype(jnp.float32).reshape(H, 1),   # (40, 1) == w3.T
        "b3": params["b3"].astype(jnp.float32).reshape(1, 1),   # (1, 1)
    }


def _round_up(n, m):
    return pl.cdiv(n, m) * m


def predictor_forward(x, prepared, *, tb=512):
    """x: (B, 1) float32. prepared: output of prepare_params()."""
    B = x.shape[0]

    # Lane-dense batch tile: always a multiple of 128 lanes.
    tb = max(128, _round_up(int(tb), 128))
    tb = min(tb, _round_up(B, 128))              # never bigger than padded batch
    if B > 128:
        # Keep >= 2 grid steps so the "parallel" axis can shard across both
        # TensorCores on v7x (harmless on v5e/v6e single-TC chips).
        tb = min(tb, max(128, _round_up(pl.cdiv(B, 2), 128)))
    Bp = _round_up(B, tb)
    n_steps = Bp // tb

    # Batch goes to the lane (last) axis; a single pad, no scatter-into-zeros.
    xt = jnp.pad(x.astype(jnp.float32).reshape(1, B), ((0, 0), (0, Bp - B)))

    # Weights/biases: full-array blocks with constant index_map -> DMA'd once,
    # VMEM-resident across all batch-tile steps.
    const = lambda a: pl.BlockSpec(a.shape, lambda i: (0,) * a.ndim)

    param_bytes = sum(int(v.size) * 4 for v in prepared.values())
    cost = pl.CostEstimate(
        flops=Bp * (2 * H * H + 6 * H + 2),
        transcendentals=0,
        bytes_accessed=2 * Bp * 4 + param_bytes,
    )

    out = pl.pallas_call(
        mlp_kernel,
        out_shape=jax.ShapeDtypeStruct((1, Bp), jnp.float32),
        grid=(n_steps,),
        in_specs=[pl.BlockSpec((1, tb), lambda i: (0, i)),
                  const(prepared["w1"]), const(prepared["b1"]),
                  const(prepared["w2"]), const(prepared["b2"]),
                  const(prepared["w3"]), const(prepared["b3"])],
        out_specs=pl.BlockSpec((1, tb), lambda i: (0, i)),
        compiler_params=pltpu.CompilerParams(
            dimension_semantics=("parallel",)),
        cost_estimate=cost,
    )(xt, prepared["w1"], prepared["b1"], prepared["w2"], prepared["b2"],
      prepared["w3"], prepared["b3"])

    return out[0, :B].reshape(B, 1)


def kaiming_normal(key, shape):
    # torch.nn.init.kaiming_normal_ default: fan_in mode, gain = sqrt(2)
    fan_in = shape[1]
    std = (2.0 / fan_in) ** 0.5
    return std * jax.random.normal(key, shape, dtype=jnp.float32)


def init_params(key):
    k1, k2, k3 = jax.random.split(key, 3)
    return {
        "w1": kaiming_normal(k1, (40, 1)),
        "b1": jnp.zeros((40,), jnp.float32),
        "w2": kaiming_normal(k2, (40, 40)),
        "b2": jnp.zeros((40,), jnp.float32),
        "w3": kaiming_normal(k3, (1, 40)),
        "b3": jnp.zeros((1,), jnp.float32),
    }


def predictor_ref(x, p):
    h = jnp.maximum(x @ p["w1"].T + p["b1"], 0.0)
    h = jnp.maximum(h @ p["w2"].T + p["b2"], 0.0)
    return h @ p["w3"].T + p["b3"]


if __name__ == "__main__":
    key = jax.random.PRNGKey(0)
    kp, kx, kx2 = jax.random.split(key, 3)
    params = init_params(kp)
    prepared = prepare_params(params)   # one-time repack, reused across calls

    # Small batch (single grid step), matching the module's (B, 1) input.
    x = jax.random.normal(kx, (8, 1), dtype=jnp.float32)
    out = jax.block_until_ready(predictor_forward(x, prepared))
    ref = predictor_ref(x, params)
    assert out.shape == (8, 1)
    assert jnp.allclose(out, ref, atol=1e-4, rtol=1e-4)

    # Larger batch exercising the multi-step "parallel" batch grid path.
    x2 = jax.random.normal(kx2, (300, 1), dtype=jnp.float32)
    out2 = jax.block_until_ready(predictor_forward(x2, prepared))
    ref2 = predictor_ref(x2, params)
    assert out2.shape == (300, 1)
    assert jnp.allclose(out2, ref2, atol=1e-4, rtol=1e-4)

    print("KERNEL_OK")
</pallas_src>

<mosaic_0001>
module attributes {stable_mosaic.version = 11 : i64} {
  func.func @mlp_kernel(%arg0: i32, %arg1: memref<1x128xf32, #tpu.memory_space<vmem>>, %arg2: memref<40x1xf32, #tpu.memory_space<vmem>>, %arg3: memref<40x1xf32, #tpu.memory_space<vmem>>, %arg4: memref<40x40xf32, #tpu.memory_space<vmem>>, %arg5: memref<40x1xf32, #tpu.memory_space<vmem>>, %arg6: memref<40x1xf32, #tpu.memory_space<vmem>>, %arg7: memref<1x1xf32, #tpu.memory_space<vmem>>, %arg8: memref<1x128xf32, #tpu.memory_space<vmem>>) attributes {dimension_semantics = [#tpu.dimension_semantics<parallel>], iteration_bounds = array<i64: 1>, scalar_prefetch = 0 : i64, scratch_operands = 0 : i64, tpu.core_type = #tpu.core_type<tc>, window_params = [{transform_indices = @transform_0, window_bounds = array<i64: 1, 128>}, {pipeline_mode = #tpu.pipeline_mode<synchronous>, transform_indices = @transform_1, window_bounds = array<i64: 40, 1>}, {pipeline_mode = #tpu.pipeline_mode<synchronous>, transform_indices = @transform_2, window_bounds = array<i64: 40, 1>}, {pipeline_mode = #tpu.pipeline_mode<synchronous>, transform_indices = @transform_3, window_bounds = array<i64: 40, 40>}, {pipeline_mode = #tpu.pipeline_mode<synchronous>, transform_indices = @transform_4, window_bounds = array<i64: 40, 1>}, {pipeline_mode = #tpu.pipeline_mode<synchronous>, transform_indices = @transform_5, window_bounds = array<i64: 40, 1>}, {pipeline_mode = #tpu.pipeline_mode<synchronous>, transform_indices = @transform_6, window_bounds = array<i64: 1, 1>}, {transform_indices = @transform_7, window_bounds = array<i64: 1, 128>}]} {
    %c0 = arith.constant 0 : index
    %c0_0 = arith.constant 0 : index
    %0 = vector.load %arg1[%c0, %c0_0] : memref<1x128xf32, #tpu.memory_space<vmem>>, vector<1x128xf32>
    %c0_1 = arith.constant 0 : index
    %c0_2 = arith.constant 0 : index
    %1 = vector.load %arg2[%c0_1, %c0_2] : memref<40x1xf32, #tpu.memory_space<vmem>>, vector<40x1xf32>
    %2 = vector.broadcast %1 : vector<40x1xf32> to vector<40x128xf32>
    %3 = vector.broadcast %0 : vector<1x128xf32> to vector<40x128xf32>
    %4 = arith.mulf %2, %3 : vector<40x128xf32>
    %c0_3 = arith.constant 0 : index
    %c0_4 = arith.constant 0 : index
    %5 = vector.load %arg3[%c0_3, %c0_4] : memref<40x1xf32, #tpu.memory_space<vmem>>, vector<40x1xf32>
    %6 = vector.broadcast %5 : vector<40x1xf32> to vector<40x128xf32>
    %7 = arith.addf %4, %6 : vector<40x128xf32>
    %cst = arith.constant 0.000000e+00 : f32
    %8 = vector.broadcast %cst : f32 to vector<40x128xf32>
    %9 = arith.maximumf %7, %8 : vector<40x128xf32>
    %c0_5 = arith.constant 0 : index
    %c0_6 = arith.constant 0 : index
    %10 = vector.load %arg4[%c0_5, %c0_6] : memref<40x40xf32, #tpu.memory_space<vmem>>, vector<40x40xf32>
    %cst_7 = arith.constant dense<0.000000e+00> : vector<40x128xf32>
    %11 = tpu.matmul %10, %9, %cst_7 {dimension_numbers = #tpu.dot_dimension_numbers<[1], [0], [0], [1], [0, 0, 1, 1], [], []>} : vector<40x40xf32>, vector<40x128xf32>, vector<40x128xf32> -> vector<40x128xf32>
    %c0_8 = arith.constant 0 : index
    %c0_9 = arith.constant 0 : index
    %12 = vector.load %arg5[%c0_8, %c0_9] : memref<40x1xf32, #tpu.memory_space<vmem>>, vector<40x1xf32>
    %13 = vector.broadcast %12 : vector<40x1xf32> to vector<40x128xf32>
    %14 = arith.addf %11, %13 : vector<40x128xf32>
    %cst_10 = arith.constant 0.000000e+00 : f32
    %15 = vector.broadcast %cst_10 : f32 to vector<40x128xf32>
    %16 = arith.maximumf %14, %15 : vector<40x128xf32>
    %c0_11 = arith.constant 0 : index
    %c0_12 = arith.constant 0 : index
    %17 = vector.load %arg6[%c0_11, %c0_12] : memref<40x1xf32, #tpu.memory_space<vmem>>, vector<40x1xf32>
    %18 = vector.broadcast %17 : vector<40x1xf32> to vector<40x128xf32>
    %19 = arith.mulf %18, %16 : vector<40x128xf32>
    %cst_13 = arith.constant dense<0.000000e+00> : vector<128xf32>
    %20 = vector.multi_reduction <add>, %19, %cst_13 [0] : vector<40x128xf32> to vector<128xf32>
    %21 = vector.shape_cast %20 : vector<128xf32> to vector<1x128xf32>
    %c0_14 = arith.constant 0 : index
    %c0_15 = arith.constant 0 : index
    %22 = vector.load %arg7[%c0_14, %c0_15] : memref<1x1xf32, #tpu.memory_space<vmem>>, vector<1x1xf32>
    %23 = vector.broadcast %22 : vector<1x1xf32> to vector<1x128xf32>
    %24 = arith.addf %21, %23 : vector<1x128xf32>
    %c0_16 = arith.constant 0 : index
    %c0_17 = arith.constant 0 : index
    %25 = vector.load %arg8[%c0_16, %c0_17] : memref<1x128xf32, #tpu.memory_space<vmem>>, vector<1x128xf32>
    tpu.vector_store %arg8[%c0_16, %c0_17], %24 {strides = array<i32>} : memref<1x128xf32, #tpu.memory_space<vmem>>, vector<1x128xf32>,
    return
  }
  func.func @transform_0(%arg0: i32) -> (i32, i32) {
    %c0_i32 = arith.constant 0 : i32
    %c0_i32_0 = arith.constant 0 : i32
    return %c0_i32, %arg0 : i32, i32
  }
  func.func @transform_1(%arg0: i32) -> (i32, i32) {
    %c0_i32 = arith.constant 0 : i32
    %c0_i32_0 = arith.constant 0 : i32
    %c0_i32_1 = arith.constant 0 : i32
    return %c0_i32, %c0_i32_0 : i32, i32
  }
  func.func @transform_2(%arg0: i32) -> (i32, i32) {
    %c0_i32 = arith.constant 0 : i32
    %c0_i32_0 = arith.constant 0 : i32
    %c0_i32_1 = arith.constant 0 : i32
    return %c0_i32, %c0_i32_0 : i32, i32
  }
  func.func @transform_3(%arg0: i32) -> (i32, i32) {
    %c0_i32 = arith.constant 0 : i32
    %c0_i32_0 = arith.constant 0 : i32
    %c0_i32_1 = arith.constant 0 : i32
    return %c0_i32, %c0_i32_0 : i32, i32
  }
  func.func @transform_4(%arg0: i32) -> (i32, i32) {
    %c0_i32 = arith.constant 0 : i32
    %c0_i32_0 = arith.constant 0 : i32
    %c0_i32_1 = arith.constant 0 : i32
    return %c0_i32, %c0_i32_0 : i32, i32
  }
  func.func @transform_5(%arg0: i32) -> (i32, i32) {
    %c0_i32 = arith.constant 0 : i32
    %c0_i32_0 = arith.constant 0 : i32
    %c0_i32_1 = arith.constant 0 : i32
    return %c0_i32, %c0_i32_0 : i32, i32
  }
  func.func @transform_6(%arg0: i32) -> (i32, i32) {
    %c0_i32 = arith.constant 0 : i32
    %c0_i32_0 = arith.constant 0 : i32
    %c0_i32_1 = arith.constant 0 : i32
    return %c0_i32, %c0_i32_0 : i32, i32
  }
  func.func @transform_7(%arg0: i32) -> (i32, i32) {
    %c0_i32 = arith.constant 0 : i32
    %c0_i32_0 = arith.constant 0 : i32
    return %c0_i32, %arg0 : i32, i32
  }
}

</mosaic_0001>

<llo_original>
// kernel: tpu_custom_call.1
$region0: #{tpu_custom_call.1}
  #allocation0 [shape = 'u32[]', space=smem, size = 0x4, offset = 0x4, fixed_abs, tag = 'smem constant byte address 0x4 - core index']
  #allocation1 [shape = 'u32[72,128]{1,0:T(1,128)}', space=vmem, size = 0x9000, scoped, tag = 'internal scratch']
  #allocation2 [shape = 'f32[1,1]{1,0:T(1,128)S(1)}', space=vmem, size = 0x200, scoped, tag = 'scoped memory for tpu_custom_call.1']
  %s0 = inlined_call_operand.vmem [shape: f32[1,128], index: 0, kind: input, shape index: {}]
  %s1 = inlined_call_operand.vmem [shape: f32[40,1], index: 1, kind: input, shape index: {}]
  %s2 = inlined_call_operand.vmem [shape: f32[40,1], index: 2, kind: input, shape index: {}]
  %s3 = inlined_call_operand.vmem [shape: f32[40,40], index: 3, kind: input, shape index: {}]
  %s4 = inlined_call_operand.vmem [shape: f32[40,1], index: 4, kind: input, shape index: {}]
  %s5 = inlined_call_operand.vmem [shape: f32[40,1], index: 5, kind: input, shape index: {}]
  %s6 = inlined_call_operand.<no memory space> [shape: f32[1,1], index: 6, kind: input, shape index: {}]
  %s7 = inlined_call_operand.hbm [shape: f32[1,128], index: 7, kind: output, shape index: {}]
  %s8 = sld [smem:[#allocation0]]
  $region38: #{tpu_custom_call.1} parent=0
    _
  %s10 = ssub.s32 1, %s8
  %s11 = scalar_select 0, %s10, %s8
  %v12 = vstv %s6
  %13 = vst [vmem:[#allocation2] sm:$0x1] %v12
  $region1: #{tpu_custom_call.1} parent=0
    #allocation3 [shape = 'u8[512]{0}', space=vmem, size = 0x400, scoped, tag = 'output window, operand 0, single buffered']
    #allocation4 [shape = 's32[1]{0}', space=sflag, size = 0x4, scoped, tag = 'scoped memory for tpu_custom_call.1']
    %14 = vsyncpa [#allocation4], 0
    // Predicated region
    $region2: #{tpu_custom_call.1} parent=1 // pred_check
      _
    $region3: #{tpu_custom_call.1} parent=1 // pred_check_branch
      %16 = sbr.rel (0) target = $region5
    $region4: #{tpu_custom_call.1} parent=1 // pred_region
      _
    $region5: #{tpu_custom_call.1} parent=1 // pred_fallthru
      _
    // Predicated region
    $region6: #{tpu_custom_call.1} parent=1 // pred_check
      _
    $region7: #{tpu_custom_call.1} parent=1 // pred_check_branch
      %18 = sbr.rel (0) target = $region9
    $region8: #{tpu_custom_call.1} parent=1 // pred_region
      _
    $region9: #{tpu_custom_call.1} parent=1 // pred_fallthru
      _
    // Predicated region
    $region10: #{tpu_custom_call.1} parent=1 // pred_check
      _
    $region11: #{tpu_custom_call.1} parent=1 // pred_check_branch
      %20 = sbr.rel (0) target = $region13
    $region12: #{tpu_custom_call.1} parent=1 // pred_region
      _
    $region13: #{tpu_custom_call.1} parent=1 // pred_fallthru
      _
    // Predicated region
    $region14: #{tpu_custom_call.1} parent=1 // pred_check
      _
    $region15: #{tpu_custom_call.1} parent=1 // pred_check_branch
      %22 = sbr.rel (0) target = $region17
    $region16: #{tpu_custom_call.1} parent=1 // pred_region
      _
    $region17: #{tpu_custom_call.1} parent=1 // pred_fallthru
      _
    // Predicated region
    $region18: #{tpu_custom_call.1} parent=1 // pred_check
      _
    $region19: #{tpu_custom_call.1} parent=1 // pred_check_branch
      %24 = sbr.rel (0) target = $region21
    $region20: #{tpu_custom_call.1} parent=1 // pred_region
      _
    $region21: #{tpu_custom_call.1} parent=1 // pred_fallthru
      _
    // Predicated region
    $region22: #{tpu_custom_call.1} parent=1 // pred_check
      _
    $region23: #{tpu_custom_call.1} parent=1 // pred_check_branch
      %26 = sbr.rel (0) target = $region25
    $region24: #{tpu_custom_call.1} parent=1 // pred_region
      _
    $region25: #{tpu_custom_call.1} parent=1 // pred_fallthru
      _
    // Predicated region
    $region26: #{tpu_custom_call.1} parent=1 // pred_check
      _
    $region27: #{tpu_custom_call.1} parent=1 // pred_check_branch
      %28 = sbr.rel (0) target = $region29
    $region28: #{tpu_custom_call.1} parent=1 // pred_region
      _
    $region29: #{tpu_custom_call.1} parent=1 // pred_fallthru
      _
    %v29 = vld [vmem:[%s0] sm:$0x1]
    %v30 = vld [vmem:[%s1] sm:$0xff]
    %v31 = vld [vmem:[%s1 + $0x8] sm:$0xff]
    %v32 = vld [vmem:[%s1 + $0x10] sm:$0xff]
    %v33 = vld [vmem:[%s1 + $0x18] sm:$0xff]
    %v34 = vld [vmem:[%s1 + $0x20] sm:$0xff]
    %36 = vset.pattern.permute.xlu0 0
    %37 = vperm.xlu0 %36, %v30
    %v38 = vpop.permute.xlu0 %37
    %41 = vset.pattern.permute.xlu0 0
    %42 = vperm.xlu0 %41, %v31
    %v43 = vpop.permute.xlu0 %42
    %46 = vset.pattern.permute.xlu0 0
    %47 = vperm.xlu0 %46, %v32
    %v48 = vpop.permute.xlu0 %47
    %51 = vset.pattern.permute.xlu0 0
    %52 = vperm.xlu0 %51, %v33
    %v53 = vpop.permute.xlu0 %52
    %56 = vset.pattern.permute.xlu0 0
    %57 = vperm.xlu0 %56, %v34
    %v58 = vpop.permute.xlu0 %57
    %v61 = vperm.slane %v29, 0
    %v63 = vmul.f32 %v38, %v61
    %v64 = vmul.f32 %v43, %v61
    %v65 = vmul.f32 %v48, %v61
    %v66 = vmul.f32 %v53, %v61
    %v67 = vmul.f32 %v58, %v61
    %v68 = vld [vmem:[%s2] sm:$0xff]
    %v69 = vld [vmem:[%s2 + $0x8] sm:$0xff]
    %v70 = vld [vmem:[%s2 + $0x10] sm:$0xff]
    %v71 = vld [vmem:[%s2 + $0x18] sm:$0xff]
    %v72 = vld [vmem:[%s2 + $0x20] sm:$0xff]
    %74 = vset.pattern.permute.xlu0 0
    %75 = vperm.xlu0 %74, %v68
    %v76 = vpop.permute.xlu0 %75
    %79 = vset.pattern.permute.xlu0 0
    %80 = vperm.xlu0 %79, %v69
    %v81 = vpop.permute.xlu0 %80
    %84 = vset.pattern.permute.xlu0 0
    %85 = vperm.xlu0 %84, %v70
    %v86 = vpop.permute.xlu0 %85
    %89 = vset.pattern.permute.xlu0 0
    %90 = vperm.xlu0 %89, %v71
    %v91 = vpop.permute.xlu0 %90
    %94 = vset.pattern.permute.xlu0 0
    %95 = vperm.xlu0 %94, %v72
    %v96 = vpop.permute.xlu0 %95
    %v98 = vadd.f32 %v63, %v76
    %v99 = vadd.f32 %v64, %v81
    %v100 = vadd.f32 %v65, %v86
    %v101 = vadd.f32 %v66, %v91
    %v102 = vadd.f32 %v67, %v96
    %v103 = vmax.f32 %v98, 0.0
    %v104 = vmax.f32 %v99, 0.0
    %v105 = vmax.f32 %v100, 0.0
    %v106 = vmax.f32 %v101, 0.0
    %v107 = vmax.f32 %v102, 0.0
    %v108 = vld [vmem:[%s3] sm:$0xff]
    %v109 = vld [vmem:[%s3 + $0x8] sm:$0xff]
    %v110 = vld [vmem:[%s3 + $0x10] sm:$0xff]
    %v111 = vld [vmem:[%s3 + $0x18] sm:$0xff]
    %v112 = vld [vmem:[%s3 + $0x20] sm:$0xff]
    %v113 = vld [vmem:[%s4] sm:$0xff]
    %v114 = vld [vmem:[%s4 + $0x8] sm:$0xff]
    %v115 = vld [vmem:[%s4 + $0x10] sm:$0xff]
    %v116 = vld [vmem:[%s4 + $0x18] sm:$0xff]
    %v117 = vld [vmem:[%s4 + $0x20] sm:$0xff]
    %119 = vset.pattern.permute.xlu0 0
    %120 = vperm.xlu0 %119, %v113
    %v121 = vpop.permute.xlu0 %120
    %124 = vset.pattern.permute.xlu0 0
    %125 = vperm.xlu0 %124, %v114
    %v126 = vpop.permute.xlu0 %125
    %129 = vset.pattern.permute.xlu0 0
    %130 = vperm.xlu0 %129, %v115
    %v131 = vpop.permute.xlu0 %130
    %134 = vset.pattern.permute.xlu0 0
    %135 = vperm.xlu0 %134, %v116
    %v136 = vpop.permute.xlu0 %135
    %139 = vset.pattern.permute.xlu0 0
    %140 = vperm.xlu0 %139, %v117
    %v141 = vpop.permute.xlu0 %140
    %vm143 = vcmask 326656
    %v145 = vsel %vm143, %v108, 0
    %v148 = vsel %vm143, %v109, 0
    %v151 = vsel %vm143, %v110, 0
    %v154 = vsel %vm143, %v111, 0
    %v157 = vsel %vm143, %v112, 0
    %159 = vmatpush.msra.mxu0 0.0
    %160 = vmatpush.msra.mxu0 0.0
    %161 = vmatpush.msra.mxu0 0.0
    %162 = vmatpush.msra.mxu0 0.0
    %163 = vmatpush.msra.mxu0 0.0
    %164 = vmatpush.msra.mxu0 0.0
    %165 = vmatpush.msra.mxu0 0.0
    %166 = vmatpush.msra.mxu0 0.0
    %167 = vmatpush.msra.mxu0 0.0
    %168 = vmatpush.msra.mxu0 0.0
    %169 = vmatpush.msra.mxu0 0.0
    %170 = vmatpush.msra.mxu0 %v107
    %171 = vmatpush.msra.mxu0 %v106
    %172 = vmatpush.msra.mxu0 %v105
    %173 = vmatpush.msra.mxu0 %v104
    %174 = vmatpush.msra.mxu0 %v103
    %175 = vmatmul.f32.gmra.mxu0 %v145
    %v176 = vpop.f32.mrf.mxu0
    %v177 = vadd.f32 %v121, %v176
    %178 = vmatmul.f32.gmra.mxu0 %v148
    %v179 = vpop.f32.mrf.mxu0
    %v180 = vadd.f32 %v126, %v179
    %181 = vmatmul.f32.gmra.mxu0 %v151
    %v182 = vpop.f32.mrf.mxu0
    %v183 = vadd.f32 %v131, %v182
    %184 = vmatmul.f32.gmra.mxu0 %v154
    %v185 = vpop.f32.mrf.mxu0
    %v186 = vadd.f32 %v136, %v185
    %187 = vmatmul.f32.gmra.mxu0 %v157
    %v188 = vpop.f32.mrf.mxu0
    %v189 = vadd.f32 %v141, %v188
    %190 = vdwg.mxu0
    %v191 = vmax.f32 %v177, 0.0
    %v192 = vmax.f32 %v180, 0.0
    %v193 = vmax.f32 %v183, 0.0
    %v194 = vmax.f32 %v186, 0.0
    %v195 = vmax.f32 %v189, 0.0
    %v196 = vld [vmem:[%s5] sm:$0xff]
    %v197 = vld [vmem:[%s5 + $0x8] sm:$0xff]
    %v198 = vld [vmem:[%s5 + $0x10] sm:$0xff]
    %v199 = vld [vmem:[%s5 + $0x18] sm:$0xff]
    %v200 = vld [vmem:[%s5 + $0x20] sm:$0xff]
    %202 = vset.pattern.permute.xlu0 0
    %203 = vperm.xlu0 %202, %v196
    %v204 = vpop.permute.xlu0 %203
    %207 = vset.pattern.permute.xlu0 0
    %208 = vperm.xlu0 %207, %v197
    %v209 = vpop.permute.xlu0 %208
    %212 = vset.pattern.permute.xlu0 0
    %213 = vperm.xlu0 %212, %v198
    %v214 = vpop.permute.xlu0 %213
    %217 = vset.pattern.permute.xlu0 0
    %218 = vperm.xlu0 %217, %v199
    %v219 = vpop.permute.xlu0 %218
    %222 = vset.pattern.permute.xlu0 0
    %223 = vperm.xlu0 %222, %v200
    %v224 = vpop.permute.xlu0 %223
    %v226 = vmul.f32 %v204, %v191
    %v227 = vmul.f32 %v209, %v192
    %v228 = vmul.f32 %v214, %v193
    %v229 = vmul.f32 %v219, %v194
    %v230 = vmul.f32 %v224, %v195
    %v231 = vadd.f32 %v226, %v227
    %v232 = vadd.f32 %v231, %v228
    %v233 = vadd.f32 %v232, %v229
    %v234 = vadd.f32 %v233, %v230
    %v235 = vrot.slane %v234, 4
    %v236 = vadd.f32 %v234, %v235
    %v237 = vrot.slane %v236, 2
    %v238 = vadd.f32 %v236, %v237
    %v239 = vrot.slane %v238, 1
    %v240 = vadd.f32 %v238, %v239
    %v241 = vld [vmem:[#allocation2] sm:$0x1]
    %243 = vset.pattern.permute.xlu0 0
    %244 = vperm.xlu0 %243, %v241
    %v245 = vpop.permute.xlu0 %244
    %v247 = vperm.slane %v245, 0
    %v248 = vadd.f32 %v240, %v247
    %249 = vst [vmem:[#allocation3] sm:$0x1] %v248
    // Predicated region
    $region30: #{tpu_custom_call.1} parent=1 // pred_check
      _
    $region31: #{tpu_custom_call.1} parent=1 // pred_check_branch
      %251 = sbr.rel (0) target = $region33
    $region32: #{tpu_custom_call.1} parent=1 // pred_region
      %253 = vsyncadd [#allocation4], 0
      %s255 = sshll.u32 [#allocation3], 4
      %s256 = int_to_ptr.vmem [resolvable:$true] %s255
      %s257 = sshll.u32 %s7, 4
      %s258 = int_to_ptr.hbm [resolvable:$true] %s257
      %260 = dma.vmem_to_hbm [thread:$0]  %s256, 16, %s258, [#allocation4]
    $region33: #{tpu_custom_call.1} parent=1 // pred_fallthru
      _
    // Predicated region
    $region34: #{tpu_custom_call.1} parent=1 // pred_check
      _
    $region35: #{tpu_custom_call.1} parent=1 // pred_check_branch
      %262 = sbr.rel (0) target = $region37
    $region36: #{tpu_custom_call.1} parent=1 // pred_region
      %264 = dma.done [#allocation4], 16
    $region37: #{tpu_custom_call.1} parent=1 // pred_fallthru
      _
    %265 = vsyncpa [#allocation4], 1

</llo_original>
